<compile_context>
chip_gen: v7x
topology: tpu7x:2x2x1
jax: 0.10.0
libtpu: 0.0.40
codegen_flags: <defaults>
</compile_context>

<pallas_src>
import functools

import jax
import jax.numpy as jnp
from jax import lax
from jax.experimental import pallas as pl
from jax.experimental.pallas import tpu as pltpu


def _make_kernel(assume_orthogonal: bool):
    def kernel(base_ref, source_ref, rot_ref, masks_ref, temp_ref, out_ref):
        R = rot_ref[...]                     # (D, D), native dtype, VMEM-resident
        base = base_ref[...]                 # (TB, D)
        source = source_ref[...]             # (TB, D)

        # Boundary mask: sigmoid(masks * (1/temperature)); reciprocal-multiply,
        # cheap (D elements) so recomputing per batch tile is fine.
        inv_temp = 1.0 / temp_ref[0, 0]
        m = jax.nn.sigmoid(masks_ref[...].astype(jnp.float32) * inv_temp)  # (1, D)

        if assume_orthogonal:
            # out = base + (m * ((source - base) @ R)) @ R.T   (2 matmuls)
            delta = (source - base).astype(R.dtype)
            rot_delta = lax.dot_general(
                delta, R, (((1,), (0,)), ((), ())),
                preferred_element_type=jnp.float32)
            masked = (m * rot_delta).astype(R.dtype)
            back = lax.dot_general(
                masked, R, (((1,), (1,)), ((), ())),   # @ R.T without transpose
                preferred_element_type=jnp.float32)
            out = base.astype(jnp.float32) + back
        else:
            # Exact module math: fuse the two forward matmuls into one MXU pass.
            tb = base.shape[0]
            stacked = jnp.concatenate([base, source], axis=0)   # (2*TB, D)
            rotated = lax.dot_general(
                stacked, R, (((1,), (0,)), ((), ())),
                preferred_element_type=jnp.float32)             # (2*TB, D) f32
            rb = rotated[:tb]
            rs = rotated[tb:]
            blended = rb + m * (rs - rb)                        # f32 blend
            out = lax.dot_general(
                blended.astype(R.dtype), R, (((1,), (1,)), ((), ())),  # @ R.T
                preferred_element_type=jnp.float32)

        out_ref[...] = out.astype(out_ref.dtype)

    return kernel


def _choose_batch_tile(batch: int) -> int:
    # Biggest tile that keeps VMEM sane; multiples of 256 match the v6e/v7x
    # 256-wide MXU; small batches run as a single full-extent block.
    if batch <= 512:
        return batch
    return 512


@functools.partial(jax.jit, static_argnames=("assume_orthogonal",))
def sigmoid_mask_rotated_space_intervention(base, source, rotate_weight, masks,
                                            temperature,
                                            assume_orthogonal: bool = False):
    """base, source: (batch, embed_dim); rotate_weight: (embed_dim, embed_dim)
    (assumed already orthonormal, as produced by torch's orthogonal
    parametrization); masks: (embed_dim,); temperature: scalar."""
    batch, embed_dim = base.shape
    masks2d = masks.reshape(1, embed_dim)
    temp2d = jnp.asarray(temperature, jnp.float32).reshape(1, 1)

    tb = _choose_batch_tile(batch)
    grid = (pl.cdiv(batch, tb),)

    return pl.pallas_call(
        _make_kernel(assume_orthogonal),
        out_shape=jax.ShapeDtypeStruct((batch, embed_dim), base.dtype),
        grid=grid,
        in_specs=[
            pl.BlockSpec((tb, embed_dim), lambda i: (i, 0)),          # base tile
            pl.BlockSpec((tb, embed_dim), lambda i: (i, 0)),          # source tile
            pl.BlockSpec((embed_dim, embed_dim), lambda i: (0, 0)),   # R, resident
            pl.BlockSpec((1, embed_dim), lambda i: (0, 0)),           # masks, resident
            pl.BlockSpec(memory_space=pltpu.SMEM),                    # temperature
        ],
        out_specs=pl.BlockSpec((tb, embed_dim), lambda i: (i, 0)),
        compiler_params=pltpu.CompilerParams(
            dimension_semantics=("parallel",),   # megacore on v7x, no-op elsewhere
        ),
    )(base, source, rotate_weight, masks2d, temp2d)


def _reference(base, source, rotate_weight, masks, temperature):
    rb = base.astype(jnp.float32) @ rotate_weight.astype(jnp.float32)
    rs = source.astype(jnp.float32) @ rotate_weight.astype(jnp.float32)
    m = jax.nn.sigmoid(masks.astype(jnp.float32) / temperature)[None, :]
    out = ((1.0 - m) * rb + m * rs) @ rotate_weight.astype(jnp.float32).T
    return out.astype(base.dtype)


if __name__ == "__main__":
    key = jax.random.PRNGKey(0)
    k_base, k_src, k_rot, k_base2, k_src2 = jax.random.split(key, 5)

    # --- small shape consistent with the module ---
    batch, embed_dim = 8, 32
    base = jax.random.normal(k_base, (batch, embed_dim), dtype=jnp.float32)
    source = jax.random.normal(k_src, (batch, embed_dim), dtype=jnp.float32)

    # Deterministic orthonormal rotation (stand-in for torch's orthogonal
    # parametrization).
    # TODO(synk): the torch orthogonal parametrization itself (Householder/QR
    # reparameterization of a trainable matrix) is a training-time construct
    # with no Pallas equivalent; the kernel consumes the realized weight.
    raw = jax.random.normal(k_rot, (embed_dim, embed_dim), dtype=jnp.float32)
    rotate_weight, _ = jnp.linalg.qr(raw)

    # Module init values: masks = 100.0 per dim, temperature = 50.0.
    masks = jnp.full((embed_dim,), 100.0, dtype=jnp.float32)
    temperature = jnp.float32(50.0)

    out = sigmoid_mask_rotated_space_intervention(base, source, rotate_weight,
                                                  masks, temperature)
    out = jax.block_until_ready(out)
    ref = _reference(base, source, rotate_weight, masks, temperature)
    assert out.shape == (batch, embed_dim)
    assert out.dtype == base.dtype
    assert jnp.allclose(out, ref, atol=1e-4, rtol=1e-4), "mismatch vs reference"

    # Orthogonality shortcut path (exact only because R is orthonormal here).
    out_fast = sigmoid_mask_rotated_space_intervention(
        base, source, rotate_weight, masks, temperature, assume_orthogonal=True)
    out_fast = jax.block_until_ready(out_fast)
    assert jnp.allclose(out_fast, ref, atol=1e-3, rtol=1e-3), \
        "orthogonal-shortcut mismatch vs reference"

    # --- larger batch to exercise the batch grid / pipelined path ---
    big_batch = 1024
    base_b = jax.random.normal(k_base2, (big_batch, embed_dim), dtype=jnp.float32)
    source_b = jax.random.normal(k_src2, (big_batch, embed_dim), dtype=jnp.float32)
    out_b = sigmoid_mask_rotated_space_intervention(base_b, source_b,
                                                    rotate_weight, masks,
                                                    temperature)
    out_b = jax.block_until_ready(out_b)
    ref_b = _reference(base_b, source_b, rotate_weight, masks, temperature)
    assert jnp.allclose(out_b, ref_b, atol=1e-4, rtol=1e-4), \
        "gridded path mismatch vs reference"

    print("KERNEL_OK")
</pallas_src>

<mosaic_0001>
module attributes {stable_mosaic.version = 11 : i64} {
  func.func @kernel(%arg0: i32, %arg1: memref<8x32xf32, #tpu.memory_space<vmem>>, %arg2: memref<8x32xf32, #tpu.memory_space<vmem>>, %arg3: memref<32x32xf32, #tpu.memory_space<vmem>>, %arg4: memref<1x32xf32, #tpu.memory_space<vmem>>, %arg5: memref<1x1xf32, #tpu.memory_space<smem>>, %arg6: memref<8x32xf32, #tpu.memory_space<vmem>>) attributes {dimension_semantics = [#tpu.dimension_semantics<parallel>], iteration_bounds = array<i64: 1>, scalar_prefetch = 0 : i64, scratch_operands = 0 : i64, tpu.core_type = #tpu.core_type<tc>, window_params = [{transform_indices = @transform_0, window_bounds = array<i64: 8, 32>}, {transform_indices = @transform_1, window_bounds = array<i64: 8, 32>}, {pipeline_mode = #tpu.pipeline_mode<synchronous>, transform_indices = @transform_2, window_bounds = array<i64: 32, 32>}, {pipeline_mode = #tpu.pipeline_mode<synchronous>, transform_indices = @transform_3, window_bounds = array<i64: 1, 32>}, {transform_indices = @transform_4, window_bounds = array<i64: 1, 1>}, {transform_indices = @transform_5, window_bounds = array<i64: 8, 32>}]} {
    %c0 = arith.constant 0 : index
    %c0_0 = arith.constant 0 : index
    %0 = vector.load %arg3[%c0, %c0_0] : memref<32x32xf32, #tpu.memory_space<vmem>>, vector<32x32xf32>
    %c0_1 = arith.constant 0 : index
    %c0_2 = arith.constant 0 : index
    %1 = vector.load %arg1[%c0_1, %c0_2] : memref<8x32xf32, #tpu.memory_space<vmem>>, vector<8x32xf32>
    %c0_3 = arith.constant 0 : index
    %c0_4 = arith.constant 0 : index
    %2 = vector.load %arg2[%c0_3, %c0_4] : memref<8x32xf32, #tpu.memory_space<vmem>>, vector<8x32xf32>
    %c0_5 = arith.constant 0 : index
    %c0_6 = arith.constant 0 : index
    %3 = memref.load %arg5[%c0_5, %c0_6] : memref<1x1xf32, #tpu.memory_space<smem>>
    %cst = arith.constant 1.000000e+00 : f32
    %4 = arith.divf %cst, %3 : f32
    %c0_7 = arith.constant 0 : index
    %c0_8 = arith.constant 0 : index
    %5 = vector.load %arg4[%c0_7, %c0_8] : memref<1x32xf32, #tpu.memory_space<vmem>>, vector<1x32xf32>
    %6 = vector.broadcast %4 : f32 to vector<1x32xf32>
    %7 = arith.mulf %5, %6 : vector<1x32xf32>
    %8 = arith.negf %7 : vector<1x32xf32>
    %9 = math.exp %8 : vector<1x32xf32>
    %cst_9 = arith.constant 1.000000e+00 : f32
    %10 = vector.broadcast %cst_9 : f32 to vector<1x32xf32>
    %11 = arith.addf %10, %9 : vector<1x32xf32>
    %12 = arith.divf %10, %11 : vector<1x32xf32>
    %13 = tpu.concatenate %1, %2 in 0 : vector<8x32xf32>, vector<8x32xf32> -> vector<16x32xf32>
    %cst_10 = arith.constant dense<0.000000e+00> : vector<16x32xf32>
    %14 = tpu.matmul %13, %0, %cst_10 {dimension_numbers = #tpu.dot_dimension_numbers<[1], [0], [0], [1], [0, 0, 1, 1], [], []>} : vector<16x32xf32>, vector<32x32xf32>, vector<16x32xf32> -> vector<16x32xf32>
    %15 = vector.extract_strided_slice %14 {offsets = [0, 0], sizes = [8, 32], strides = [1, 1]} : vector<16x32xf32> to vector<8x32xf32>
    %16 = vector.extract_strided_slice %14 {offsets = [8, 0], sizes = [8, 32], strides = [1, 1]} : vector<16x32xf32> to vector<8x32xf32>
    %17 = arith.subf %16, %15 : vector<8x32xf32>
    %18 = vector.broadcast %12 : vector<1x32xf32> to vector<8x32xf32>
    %19 = arith.mulf %18, %17 : vector<8x32xf32>
    %20 = arith.addf %15, %19 : vector<8x32xf32>
    %cst_11 = arith.constant dense<0.000000e+00> : vector<8x32xf32>
    %21 = tpu.matmul %20, %0, %cst_11 {dimension_numbers = #tpu.dot_dimension_numbers<[1], [1], [0], [0], [0, 0, 1, 0], [], []>} : vector<8x32xf32>, vector<32x32xf32>, vector<8x32xf32> -> vector<8x32xf32>
    %c0_12 = arith.constant 0 : index
    %c0_13 = arith.constant 0 : index
    %22 = vector.load %arg6[%c0_12, %c0_13] : memref<8x32xf32, #tpu.memory_space<vmem>>, vector<8x32xf32>
    tpu.vector_store %arg6[%c0_12, %c0_13], %21 {strides = array<i32>} : memref<8x32xf32, #tpu.memory_space<vmem>>, vector<8x32xf32>,
    return
  }
  func.func @transform_0(%arg0: i32) -> (i32, i32) {
    %c0_i32 = arith.constant 0 : i32
    %c0_i32_0 = arith.constant 0 : i32
    return %arg0, %c0_i32 : i32, i32
  }
  func.func @transform_1(%arg0: i32) -> (i32, i32) {
    %c0_i32 = arith.constant 0 : i32
    %c0_i32_0 = arith.constant 0 : i32
    return %arg0, %c0_i32 : i32, i32
  }
  func.func @transform_2(%arg0: i32) -> (i32, i32) {
    %c0_i32 = arith.constant 0 : i32
    %c0_i32_0 = arith.constant 0 : i32
    %c0_i32_1 = arith.constant 0 : i32
    return %c0_i32, %c0_i32_0 : i32, i32
  }
  func.func @transform_3(%arg0: i32) -> (i32, i32) {
    %c0_i32 = arith.constant 0 : i32
    %c0_i32_0 = arith.constant 0 : i32
    %c0_i32_1 = arith.constant 0 : i32
    return %c0_i32, %c0_i32_0 : i32, i32
  }
  func.func @transform_4(%arg0: i32) -> (i32, i32) {
    %c0_i32 = arith.constant 0 : i32
    %c0_i32_0 = arith.constant 0 : i32
    %c0_i32_1 = arith.constant 0 : i32
    return %c0_i32, %c0_i32_0 : i32, i32
  }
  func.func @transform_5(%arg0: i32) -> (i32, i32) {
    %c0_i32 = arith.constant 0 : i32
    %c0_i32_0 = arith.constant 0 : i32
    return %arg0, %c0_i32 : i32, i32
  }
}

</mosaic_0001>

<llo_original>
// kernel: sigmoid_mask_rotated_space_intervention.1
$region0: #{sigmoid_mask_rotated_space_intervention.1}
  #allocation0 [shape = 'u32[]', space=smem, size = 0x4, offset = 0x4, fixed_abs, tag = 'smem constant byte address 0x4 - core index']
  #allocation1 [shape = 'u32[144,128]{1,0:T(1,128)}', space=vmem, size = 0x12000, scoped, tag = 'internal scratch']
  #allocation2 [shape = 'f32[1,1]{1,0:T(1,128)S(6)}', space=smem, size = 0x200, scoped, tag = 'scoped memory for sigmoid_mask_rotated_space_intervention.1']
  %s0 = inlined_call_operand.vmem [shape: f32[8,32], index: 0, kind: input, shape index: {}]
  %s1 = inlined_call_operand.hbm [shape: f32[8,32], index: 1, kind: input, shape index: {}]
  %s2 = inlined_call_operand.hbm [shape: f32[32,32], index: 2, kind: input, shape index: {}]
  %s3 = inlined_call_operand.vmem [shape: f32[1,32], index: 3, kind: input, shape index: {}]
  %s4 = inlined_call_operand.<no memory space> [shape: f32[1,1], index: 4, kind: input, shape index: {}]
  %s5 = inlined_call_operand.hbm [shape: f32[8,32], index: 5, kind: output, shape index: {}]
  %s6 = sld [smem:[#allocation0]]
  $region38: #{sigmoid_mask_rotated_space_intervention.1} parent=0
    _
  %s8 = ssub.s32 1, %s6
  %s9 = scalar_select 0, %s8, %s6
  %10 = sst [smem:[#allocation2]] %s4
  $region1: #{sigmoid_mask_rotated_space_intervention.1} parent=0
    #allocation3 [shape = 'u8[4096]{0}', space=vmem, size = 0x1000, scoped, tag = 'input window, operand 1, single buffered']
    #allocation4 [shape = 's32[1]{0}', space=sflag, size = 0x4, scoped, tag = 'scoped memory for sigmoid_mask_rotated_space_intervention.1']
    #allocation5 [shape = 's32[1]{0}', space=sflag, size = 0x4, scoped, tag = 'scoped memory for sigmoid_mask_rotated_space_intervention.1']
    #allocation6 [shape = 'u8[16384]{0}', space=vmem, size = 0x4000, scoped, tag = 'input window, operand 2, single buffered']
    #allocation7 [shape = 's32[1]{0}', space=sflag, size = 0x4, scoped, tag = 'scoped memory for sigmoid_mask_rotated_space_intervention.1']
    #allocation8 [shape = 'u8[4096]{0}', space=vmem, size = 0x1000, scoped, tag = 'output window, operand 0, single buffered']
    %11 = vsyncpa [#allocation4], 0
    %12 = vsyncpa [#allocation7], 0
    %13 = vsyncpa [#allocation5], 0
    // Predicated region
    $region2: #{sigmoid_mask_rotated_space_intervention.1} parent=1 // pred_check
      _
    $region3: #{sigmoid_mask_rotated_space_intervention.1} parent=1 // pred_check_branch
      %15 = sbr.rel (0) target = $region5
    $region4: #{sigmoid_mask_rotated_space_intervention.1} parent=1 // pred_region
      _
    $region5: #{sigmoid_mask_rotated_space_intervention.1} parent=1 // pred_fallthru
      _
    // Predicated region
    $region6: #{sigmoid_mask_rotated_space_intervention.1} parent=1 // pred_check
      _
    $region7: #{sigmoid_mask_rotated_space_intervention.1} parent=1 // pred_check_branch
      %17 = sbr.rel (0) target = $region9
    $region8: #{sigmoid_mask_rotated_space_intervention.1} parent=1 // pred_region
      %s19 = ssub.s32 128, 128
      %20 = vsyncadd [#allocation4], %s19
      %s22 = sshll.u32 [#allocation3], 4
      %s23 = int_to_ptr.vmem [resolvable:$true] %s22
      %25 = dma.hbm_to_vmem [thread:$0]  %s1, 128, %s23, [#allocation4]
    $region9: #{sigmoid_mask_rotated_space_intervention.1} parent=1 // pred_fallthru
      _
    // Predicated region
    $region10: #{sigmoid_mask_rotated_space_intervention.1} parent=1 // pred_check
      _
    $region11: #{sigmoid_mask_rotated_space_intervention.1} parent=1 // pred_check_branch
      %27 = sbr.rel (0) target = $region13
    $region12: #{sigmoid_mask_rotated_space_intervention.1} parent=1 // pred_region
      %s29 = ssub.s32 512, 512
      %30 = vsyncadd [#allocation7], %s29
      %s31 = sshll.u32 [#allocation6], 4
      %s32 = int_to_ptr.vmem [resolvable:$true] %s31
      %37 = dma.hbm_to_vmem [thread:$0]  %s2, 512, %s32, [#allocation7], 128, 128, 8
    $region13: #{sigmoid_mask_rotated_space_intervention.1} parent=1 // pred_fallthru
      _
    // Predicated region
    $region14: #{sigmoid_mask_rotated_space_intervention.1} parent=1 // pred_check
      _
    $region15: #{sigmoid_mask_rotated_space_intervention.1} parent=1 // pred_check_branch
      %39 = sbr.rel (0) target = $region17
    $region16: #{sigmoid_mask_rotated_space_intervention.1} parent=1 // pred_region
      _
    $region17: #{sigmoid_mask_rotated_space_intervention.1} parent=1 // pred_fallthru
      _
    // Predicated region
    $region18: #{sigmoid_mask_rotated_space_intervention.1} parent=1 // pred_check
      _
    $region19: #{sigmoid_mask_rotated_space_intervention.1} parent=1 // pred_check_branch
      %41 = sbr.rel (0) target = $region21
    $region20: #{sigmoid_mask_rotated_space_intervention.1} parent=1 // pred_region
      _
    $region21: #{sigmoid_mask_rotated_space_intervention.1} parent=1 // pred_fallthru
      _
    // Predicated region
    $region22: #{sigmoid_mask_rotated_space_intervention.1} parent=1 // pred_check
      _
    $region23: #{sigmoid_mask_rotated_space_intervention.1} parent=1 // pred_check_branch
      %43 = sbr.rel (0) target = $region25
    $region24: #{sigmoid_mask_rotated_space_intervention.1} parent=1 // pred_region
      %44 = dma.done [#allocation4], 128
    $region25: #{sigmoid_mask_rotated_space_intervention.1} parent=1 // pred_fallthru
      _
    // Predicated region
    $region26: #{sigmoid_mask_rotated_space_intervention.1} parent=1 // pred_check
      _
    $region27: #{sigmoid_mask_rotated_space_intervention.1} parent=1 // pred_check_branch
      %46 = sbr.rel (0) target = $region29
    $region28: #{sigmoid_mask_rotated_space_intervention.1} parent=1 // pred_region
      %47 = dma.done [#allocation7], 512
    $region29: #{sigmoid_mask_rotated_space_intervention.1} parent=1 // pred_fallthru
      _
    %v48 = vld [vmem:[#allocation6] sm:$0xff]
    %v49 = vld [vmem:[#allocation6 + $0x8] sm:$0xff]
    %v50 = vld [vmem:[#allocation6 + $0x10] sm:$0xff]
    %v51 = vld [vmem:[#allocation6 + $0x18] sm:$0xff]
    %v52 = vld [vmem:[%s0] sm:$0xff]
    %v53 = vld [vmem:[#allocation3] sm:$0xff]
    %s54 = sld [smem:[#allocation2]]
    %v55 = vstv %s54
    %v56 = vrcp.pop %v55
    %s57 = vtos %v56
    %v58 = vld [vmem:[%s3] sm:$0x1]
    %v59 = vstv %s57
    %v60 = vmul.f32 %v58, %v59
    %v61 = vxor.u32 %v60, 2147483648
    %v62 = vmul.f32 %v61, 1.442695
    %v63 = vpow.pop %v62
    %v64 = vadd.f32 %v63, 1.0
    %v65 = vrcp.pop %v64
    %v66 = vmul.f32 1.0, %v65
    %vm67 = vcmask 261120
    %v69 = vsel %vm67, %v52, 0
    %v72 = vsel %vm67, %v53, 0
    %74 = vmatprep.subr.mxu0 0.0
    %75 = vmatpush1.msra.mxu0 %v48
    %76 = vmatprep.subr.mxu0 0.0
    %77 = vmatpush1.msra.mxu0 %v49
    %78 = vmatprep.subr.mxu0 0.0
    %79 = vmatpush1.msra.mxu0 %v50
    %80 = vmatprep.subr.mxu0 0.0
    %81 = vmatpush1.msra.mxu0 %v51
    %82 = vmatprep.subr.mxu0 0.0
    %83 = vmatpush1.msra.mxu0 0.0
    %84 = vmatprep.subr.mxu0 0.0
    %85 = vmatpush1.msra.mxu0 0.0
    %86 = vmatprep.subr.mxu0 0.0
    %87 = vmatpush1.msra.mxu0 0.0
    %88 = vmatprep.subr.mxu0 0.0
    %89 = vmatpush1.msra.mxu0 0.0
    %90 = vmatprep.subr.mxu0 0.0
    %91 = vmatpush1.msra.mxu0 0.0
    %92 = vmatprep.subr.mxu0 0.0
    %93 = vmatpush1.msra.mxu0 0.0
    %94 = vmatprep.subr.mxu0 0.0
    %95 = vmatpush1.msra.mxu0 0.0
    %96 = vmatprep.subr.mxu0 0.0
    %97 = vmatpush1.msra.mxu0 0.0
    %98 = vmatprep.subr.mxu0 0.0
    %99 = vmatpush1.msra.mxu0 0.0
    %100 = vmatprep.subr.mxu0 0.0
    %101 = vmatpush1.msra.mxu0 0.0
    %102 = vmatprep.subr.mxu0 0.0
    %103 = vmatpush1.msra.mxu0 0.0
    %104 = vmatprep.subr.mxu0 0.0
    %105 = vmatpush1.msra.mxu0 0.0
    %106 = vmatprep.subr.mxu0 0.0
    %107 = vmatpush1.msra.mxu0 0.0
    %108 = vmatprep.subr.mxu0 0.0
    %109 = vmatpush1.msra.mxu0 0.0
    %110 = vmatprep.subr.mxu0 0.0
    %111 = vmatpush1.msra.mxu0 0.0
    %112 = vmatprep.subr.mxu0 0.0
    %113 = vmatpush1.msra.mxu0 0.0
    %114 = vmatprep.subr.mxu0 0.0
    %115 = vmatpush1.msra.mxu0 0.0
    %116 = vmatprep.subr.mxu0 0.0
    %117 = vmatpush1.msra.mxu0 0.0
    %118 = vmatprep.subr.mxu0 0.0
    %119 = vmatpush1.msra.mxu0 0.0
    %120 = vmatprep.subr.mxu0 0.0
    %121 = vmatpush1.msra.mxu0 0.0
    %122 = vmatprep.subr.mxu0 0.0
    %123 = vmatpush1.msra.mxu0 0.0
    %124 = vmatprep.subr.mxu0 0.0
    %125 = vmatpush1.msra.mxu0 0.0
    %126 = vmatprep.subr.mxu0 0.0
    %127 = vmatpush1.msra.mxu0 0.0
    %128 = vmatprep.subr.mxu0 0.0
    %129 = vmatpush1.msra.mxu0 0.0
    %130 = vmatprep.subr.mxu0 0.0
    %131 = vmatpush1.msra.mxu0 0.0
    %132 = vmatprep.subr.mxu0 0.0
    %133 = vmatpush1.msra.mxu0 0.0
    %134 = vmatprep.subr.mxu0 0.0
    %135 = vmatpush1.msra.mxu0 0.0
    %136 = vmatprep.subr.mxu0 0.0
    %137 = vmatpush1.msra.mxu0 0.0
    %138 = vmatprep.mubr.f32.mxu0 0.0
    %139 = vmatmul.mubr.f32.gmra.mrb[0].mxu0 %v69
    %v140 = vpop.f32.mrb[0].mxu0
    %v141 = vadd.f32 0.0, %v140
    %v142 = vpop.f32.mrb[0].mxu0
    %143 = vmatprep.mubr.f32.mxu0 0.0
    %144 = vmatmul.mubr.f32.gmra.mrb[0].mxu0 %v72
    %v145 = vpop.f32.mrb[0].mxu0
    %v146 = vadd.f32 0.0, %v145
    %v147 = vpop.f32.mrb[0].mxu0
    %148 = vdwg.mxu0
    %v149 = vsub.f32 %v146, %v141
    %v151 = vlaneseq
    %v152 = vshrl.u32 %v151, 7
    %v153 = vsub.s32 0, %v152
    %v154 = vrot.slane %v66, %v153
    %v156 = vmul.f32 %v154, %v149
    %v157 = vadd.f32 %v141, %v156
    %v159 = vsel %vm67, %v157, 0
    %v162 = vsel %vm67, %v48, 0
    %v165 = vsel %vm67, %v49, 0
    %v168 = vsel %vm67, %v50, 0
    %v171 = vsel %vm67, %v51, 0
    %173 = vmatprep.subr.mxu0 0.0
    %174 = vmatpush1.xpose.msra.mxu0 %v162
    %175 = vmatprep.subr.mxu0 0.0
    %176 = vmatpush1.xpose.msra.mxu0 %v165
    %177 = vmatprep.subr.mxu0 0.0
    %178 = vmatpush1.xpose.msra.mxu0 %v168
    %179 = vmatprep.subr.mxu0 0.0
    %180 = vmatpush1.xpose.msra.mxu0 %v171
    %181 = vmatprep.subr.mxu0 0.0
    %182 = vmatpush1.xpose.msra.mxu0 0.0
    %183 = vmatprep.subr.mxu0 0.0
    %184 = vmatpush1.xpose.msra.mxu0 0.0
    %185 = vmatprep.subr.mxu0 0.0
    %186 = vmatpush1.xpose.msra.mxu0 0.0
    %187 = vmatprep.subr.mxu0 0.0
    %188 = vmatpush1.xpose.msra.mxu0 0.0
    %189 = vmatprep.subr.mxu0 0.0
    %190 = vmatpush1.xpose.msra.mxu0 0.0
    %191 = vmatprep.subr.mxu0 0.0
    %192 = vmatpush1.xpose.msra.mxu0 0.0
    %193 = vmatprep.subr.mxu0 0.0
    %194 = vmatpush1.xpose.msra.mxu0 0.0
    %195 = vmatprep.subr.mxu0 0.0
    %196 = vmatpush1.xpose.msra.mxu0 0.0
    %197 = vmatprep.subr.mxu0 0.0
    %198 = vmatpush1.xpose.msra.mxu0 0.0
    %199 = vmatprep.subr.mxu0 0.0
    %200 = vmatpush1.xpose.msra.mxu0 0.0
    %201 = vmatprep.subr.mxu0 0.0
    %202 = vmatpush1.xpose.msra.mxu0 0.0
    %203 = vmatprep.subr.mxu0 0.0
    %204 = vmatpush1.xpose.msra.mxu0 0.0
    %205 = vmatprep.subr.mxu0 0.0
    %206 = vmatpush1.xpose.msra.mxu0 0.0
    %207 = vmatprep.subr.mxu0 0.0
    %208 = vmatpush1.xpose.msra.mxu0 0.0
    %209 = vmatprep.subr.mxu0 0.0
    %210 = vmatpush1.xpose.msra.mxu0 0.0
    %211 = vmatprep.subr.mxu0 0.0
    %212 = vmatpush1.xpose.msra.mxu0 0.0
    %213 = vmatprep.subr.mxu0 0.0
    %214 = vmatpush1.xpose.msra.mxu0 0.0
    %215 = vmatprep.subr.mxu0 0.0
    %216 = vmatpush1.xpose.msra.mxu0 0.0
    %217 = vmatprep.subr.mxu0 0.0
    %218 = vmatpush1.xpose.msra.mxu0 0.0
    %219 = vmatprep.subr.mxu0 0.0
    %220 = vmatpush1.xpose.msra.mxu0 0.0
    %221 = vmatprep.subr.mxu0 0.0
    %222 = vmatpush1.xpose.msra.mxu0 0.0
    %223 = vmatprep.subr.mxu0 0.0
    %224 = vmatpush1.xpose.msra.mxu0 0.0
    %225 = vmatprep.subr.mxu0 0.0
    %226 = vmatpush1.xpose.msra.mxu0 0.0
    %227 = vmatprep.subr.mxu0 0.0
    %228 = vmatpush1.xpose.msra.mxu0 0.0
    %229 = vmatprep.subr.mxu0 0.0
    %230 = vmatpush1.xpose.msra.mxu0 0.0
    %231 = vmatprep.subr.mxu0 0.0
    %232 = vmatpush1.xpose.msra.mxu0 0.0
    %233 = vmatprep.subr.mxu0 0.0
    %234 = vmatpush1.xpose.msra.mxu0 0.0
    %235 = vmatprep.subr.mxu0 0.0
    %236 = vmatpush1.xpose.msra.mxu0 0.0
    %237 = vmatprep.mubr.f32.mxu0 0.0
    %238 = vmatmul.mubr.f32.gmra.mrb[0].mxu0 %v159
    %v239 = vpop.f32.mrb[0].mxu0
    %v240 = vadd.f32 0.0, %v239
    %v241 = vpop.f32.mrb[0].mxu0
    %242 = vdwg.mxu0
    %243 = vst.msk [vmem:[#allocation8] sm:$0xff] %vm67, %v240
    // Predicated region
    $region30: #{sigmoid_mask_rotated_space_intervention.1} parent=1 // pred_check
      _
    $region31: #{sigmoid_mask_rotated_space_intervention.1} parent=1 // pred_check_branch
      %245 = sbr.rel (0) target = $region33
    $region32: #{sigmoid_mask_rotated_space_intervention.1} parent=1 // pred_region
      %s247 = ssub.s32 128, 128
      %248 = vsyncadd [#allocation5], %s247
      %s250 = sshll.u32 [#allocation8], 4
      %s251 = int_to_ptr.vmem [resolvable:$true] %s250
      %253 = dma.vmem_to_hbm [thread:$0]  %s251, 128, %s5, [#allocation5]
    $region33: #{sigmoid_mask_rotated_space_intervention.1} parent=1 // pred_fallthru
      _
    // Predicated region
    $region34: #{sigmoid_mask_rotated_space_intervention.1} parent=1 // pred_check
      _
    $region35: #{sigmoid_mask_rotated_space_intervention.1} parent=1 // pred_check_branch
      %255 = sbr.rel (0) target = $region37
    $region36: #{sigmoid_mask_rotated_space_intervention.1} parent=1 // pred_region
      %256 = dma.done [#allocation5], 128
    $region37: #{sigmoid_mask_rotated_space_intervention.1} parent=1 // pred_fallthru
      _
    %257 = vsyncpa [#allocation4], 1
    %258 = vsyncpa [#allocation7], 1
    %259 = vsyncpa [#allocation5], 1

</llo_original>
